<compile_context>
chip_gen: v7x
topology: tpu7x:2x2x1
jax: 0.10.0
libtpu: 0.0.40
codegen_flags: <defaults>
</compile_context>

<pallas_src>
import jax
import jax.numpy as jnp
from jax.experimental import pallas as pl
from jax.experimental.pallas import tpu as pltpu


def _round_up(a, m):
    return ((a + m - 1) // m) * m


def _fuzzy_kernel(x_ref, params_ref, o_ref):
    # x_ref:      (TN, 1)   flattened (batch*len) rows for this grid step
    # params_ref: (2, T)    row 0 = mean, row 1 = -1/sigma^2 (resident)
    # o_ref:      (TN, T)
    x = x_ref[...]                 # (TN, 1) f32
    mean = params_ref[0:1, :]      # (1, T)
    nis2 = params_ref[1:2, :]      # (1, T)
    diff = x - mean                # (TN, T) via broadcast
    o_ref[...] = jnp.exp((diff * diff) * nis2).astype(o_ref.dtype)


def fuzzy_layer(x, mean, sigma, *, out_dtype=jnp.float32):
    """x: (B, L) f32; mean, sigma: (T,) f32 -> (B, L, T) out_dtype."""
    B, L = x.shape
    T = mean.shape[0]
    N = B * L
    Tp = _round_up(T, 128)  # lane-dense output last dim (unmasked vst)

    # Fused resident parameter slab: [mean; -1/sigma^2], padded to Tp columns.
    mean_p = jnp.zeros((Tp,), jnp.float32).at[:T].set(mean.astype(jnp.float32))
    sig = sigma.astype(jnp.float32)
    nis2_p = jnp.zeros((Tp,), jnp.float32).at[:T].set(-1.0 / (sig * sig))
    params = jnp.stack([mean_p, nis2_p], axis=0)  # (2, Tp)

    # ---- choose the row tile TN --------------------------------------------
    out_elt = jnp.dtype(out_dtype).itemsize
    # ~2 MiB output block: mem-bound plateau; keeps VMEM use small everywhere.
    tn_budget = max(8, ((2 * 1024 * 1024) // (Tp * out_elt)) // 8 * 8)
    # Aim for >= 8 grid steps (>= 4 per v7x TensorCore), floor of 512 rows.
    tn_steps = max(512, _round_up(pl.cdiv(N, 8), 8))
    TN = min(4096, tn_budget, tn_steps, N)
    if TN < N:
        TN = max(8, (TN // 8) * 8)   # multiple of 8; ragged last block is fine
    grid = (pl.cdiv(N, TN),)

    x_flat = x.astype(jnp.float32).reshape(N, 1)

    cost = pl.CostEstimate(
        flops=3 * N * Tp,
        transcendentals=N * Tp,
        bytes_accessed=N * Tp * out_elt + N * 4 + 2 * Tp * 4,
    )

    out = pl.pallas_call(
        _fuzzy_kernel,
        out_shape=jax.ShapeDtypeStruct((N, Tp), out_dtype),
        grid_spec=pltpu.PrefetchScalarGridSpec(
            num_scalar_prefetch=0,
            grid=grid,
            in_specs=[
                pl.BlockSpec((TN, 1), lambda i: (i, 0)),
                pl.BlockSpec((2, Tp), lambda i: (0, 0)),
            ],
            out_specs=pl.BlockSpec((TN, Tp), lambda i: (i, 0)),
        ),
        compiler_params=pltpu.CompilerParams(
            dimension_semantics=("parallel",),
        ),
        cost_estimate=cost,
    )(x_flat, params)

    out = out.reshape(B, L, Tp)
    if Tp != T:
        # TODO(synk): keep padded columns if the downstream consumer accepts
        # them; this slice re-copies the output through HBM.
        out = out[..., :T]
    return out


if __name__ == "__main__":
    # Small shapes consistent with the module's forward pass.
    batch_size = 4
    max_len = 16
    term_numbers = 128

    key = jax.random.PRNGKey(0)
    k_x, k_sigma = jax.random.split(key)

    # Deterministic parameter init (mirrors set_mean / set_sigma).
    mean = jnp.linspace(0.0, 1.0, term_numbers, dtype=jnp.float32)
    sigma = jax.random.uniform(k_sigma, (term_numbers,), dtype=jnp.float32,
                               minval=0.1, maxval=1.0)

    x = jax.random.uniform(k_x, (batch_size, max_len), dtype=jnp.float32)

    out = fuzzy_layer(x, mean, sigma)
    out = jax.block_until_ready(out)

    # Pure-JAX reference check (original formulation with the divide).
    ref = jnp.exp(-((x[:, :, None] - mean[None, None, :]) ** 2)
                  / (sigma[None, None, :] ** 2))
    assert out.shape == (batch_size, max_len, term_numbers)
    assert jnp.allclose(out, ref, atol=1e-6, rtol=1e-5), "mismatch vs reference"

    print("KERNEL_OK")
</pallas_src>

<mosaic_0001>
module attributes {stable_mosaic.version = 11 : i64} {
  func.func @_fuzzy_kernel(%arg0: i32, %arg1: memref<64x1xf32, #tpu.memory_space<vmem>>, %arg2: memref<2x128xf32, #tpu.memory_space<vmem>>, %arg3: memref<64x128xf32, #tpu.memory_space<vmem>>) attributes {dimension_semantics = [#tpu.dimension_semantics<parallel>], iteration_bounds = array<i64: 1>, scalar_prefetch = 0 : i64, scratch_operands = 0 : i64, tpu.core_type = #tpu.core_type<tc>, window_params = [{transform_indices = @transform_0, window_bounds = array<i64: 64, 1>}, {pipeline_mode = #tpu.pipeline_mode<synchronous>, transform_indices = @transform_1, window_bounds = array<i64: 2, 128>}, {transform_indices = @transform_2, window_bounds = array<i64: 64, 128>}]} {
    %c0 = arith.constant 0 : index
    %c0_0 = arith.constant 0 : index
    %0 = vector.load %arg1[%c0, %c0_0] : memref<64x1xf32, #tpu.memory_space<vmem>>, vector<64x1xf32>
    %c0_1 = arith.constant 0 : index
    %c0_2 = arith.constant 0 : index
    %1 = vector.load %arg2[%c0_1, %c0_2] : memref<2x128xf32, #tpu.memory_space<vmem>>, vector<1x128xf32>
    %c1 = arith.constant 1 : index
    %c0_3 = arith.constant 0 : index
    %2 = vector.load %arg2[%c1, %c0_3] : memref<2x128xf32, #tpu.memory_space<vmem>>, vector<1x128xf32>
    %3 = vector.broadcast %0 : vector<64x1xf32> to vector<64x128xf32>
    %4 = vector.broadcast %1 : vector<1x128xf32> to vector<64x128xf32>
    %5 = arith.subf %3, %4 : vector<64x128xf32>
    %6 = arith.mulf %5, %5 : vector<64x128xf32>
    %7 = vector.broadcast %2 : vector<1x128xf32> to vector<64x128xf32>
    %8 = arith.mulf %6, %7 : vector<64x128xf32>
    %9 = math.exp %8 : vector<64x128xf32>
    %c0_4 = arith.constant 0 : index
    %c0_5 = arith.constant 0 : index
    %10 = vector.load %arg3[%c0_4, %c0_5] : memref<64x128xf32, #tpu.memory_space<vmem>>, vector<64x128xf32>
    tpu.vector_store %arg3[%c0_4, %c0_5], %9 {strides = array<i32>} : memref<64x128xf32, #tpu.memory_space<vmem>>, vector<64x128xf32>,
    return
  }
  func.func @transform_0(%arg0: i32) -> (i32, i32) {
    %c0_i32 = arith.constant 0 : i32
    %c0_i32_0 = arith.constant 0 : i32
    return %arg0, %c0_i32 : i32, i32
  }
  func.func @transform_1(%arg0: i32) -> (i32, i32) {
    %c0_i32 = arith.constant 0 : i32
    %c0_i32_0 = arith.constant 0 : i32
    %c0_i32_1 = arith.constant 0 : i32
    return %c0_i32, %c0_i32_0 : i32, i32
  }
  func.func @transform_2(%arg0: i32) -> (i32, i32) {
    %c0_i32 = arith.constant 0 : i32
    %c0_i32_0 = arith.constant 0 : i32
    return %arg0, %c0_i32 : i32, i32
  }
}

</mosaic_0001>

<llo_original>
// kernel: tpu_custom_call.1
$region0: #{tpu_custom_call.1}
  #allocation0 [shape = 'u32[]', space=smem, size = 0x4, offset = 0x4, fixed_abs, tag = 'smem constant byte address 0x4 - core index']
  #allocation1 [shape = 'u32[144,128]{1,0:T(1,128)}', space=vmem, size = 0x12000, scoped, tag = 'internal scratch']
  %s0 = inlined_call_operand.vmem [shape: f32[64,1], index: 0, kind: input, shape index: {}]
  %s1 = inlined_call_operand.vmem [shape: f32[2,128], index: 1, kind: input, shape index: {}]
  %s2 = inlined_call_operand.hbm [shape: f32[64,128], index: 2, kind: output, shape index: {}]
  %s3 = sld [smem:[#allocation0]]
  $region18: #{tpu_custom_call.1} parent=0
    _
  %s5 = ssub.s32 1, %s3
  %s6 = scalar_select 0, %s5, %s3
  $region1: #{tpu_custom_call.1} parent=0
    #allocation2 [shape = 'u8[32768]{0}', space=vmem, size = 0x8000, scoped, tag = 'output window, operand 0, single buffered']
    #allocation3 [shape = 's32[1]{0}', space=sflag, size = 0x4, scoped, tag = 'scoped memory for tpu_custom_call.1']
    %7 = vsyncpa [#allocation3], 0
    // Predicated region
    $region2: #{tpu_custom_call.1} parent=1 // pred_check
      _
    $region3: #{tpu_custom_call.1} parent=1 // pred_check_branch
      %9 = sbr.rel (0) target = $region5
    $region4: #{tpu_custom_call.1} parent=1 // pred_region
      _
    $region5: #{tpu_custom_call.1} parent=1 // pred_fallthru
      _
    // Predicated region
    $region6: #{tpu_custom_call.1} parent=1 // pred_check
      _
    $region7: #{tpu_custom_call.1} parent=1 // pred_check_branch
      %11 = sbr.rel (0) target = $region9
    $region8: #{tpu_custom_call.1} parent=1 // pred_region
      _
    $region9: #{tpu_custom_call.1} parent=1 // pred_fallthru
      _
    %v12 = vld [vmem:[%s0] sm:$0xff]
    %v13 = vld [vmem:[%s0 + $0x8] sm:$0xff]
    %v14 = vld [vmem:[%s0 + $0x10] sm:$0xff]
    %v15 = vld [vmem:[%s0 + $0x18] sm:$0xff]
    %v16 = vld [vmem:[%s0 + $0x20] sm:$0xff]
    %v17 = vld [vmem:[%s0 + $0x28] sm:$0xff]
    %v18 = vld [vmem:[%s0 + $0x30] sm:$0xff]
    %v19 = vld [vmem:[%s0 + $0x38] sm:$0xff]
    %v20 = vld [vmem:[%s1] sm:$0x1]
    %v21 = vld [vmem:[%s1 + $0x1] sm:$0x1]
    %23 = vset.pattern.permute.xlu0 0
    %24 = vperm.xlu0 %23, %v12
    %v25 = vpop.permute.xlu0 %24
    %28 = vset.pattern.permute.xlu0 0
    %29 = vperm.xlu0 %28, %v13
    %v30 = vpop.permute.xlu0 %29
    %33 = vset.pattern.permute.xlu0 0
    %34 = vperm.xlu0 %33, %v14
    %v35 = vpop.permute.xlu0 %34
    %38 = vset.pattern.permute.xlu0 0
    %39 = vperm.xlu0 %38, %v15
    %v40 = vpop.permute.xlu0 %39
    %43 = vset.pattern.permute.xlu0 0
    %44 = vperm.xlu0 %43, %v16
    %v45 = vpop.permute.xlu0 %44
    %48 = vset.pattern.permute.xlu0 0
    %49 = vperm.xlu0 %48, %v17
    %v50 = vpop.permute.xlu0 %49
    %53 = vset.pattern.permute.xlu0 0
    %54 = vperm.xlu0 %53, %v18
    %v55 = vpop.permute.xlu0 %54
    %58 = vset.pattern.permute.xlu0 0
    %59 = vperm.xlu0 %58, %v19
    %v60 = vpop.permute.xlu0 %59
    %v62 = vlaneseq
    %v63 = vshrl.u32 %v62, 7
    %v64 = vsub.s32 0, %v63
    %v65 = vrot.slane %v20, %v64
    %v66 = vsub.f32 %v25, %v65
    %v67 = vsub.f32 %v30, %v65
    %v68 = vsub.f32 %v35, %v65
    %v69 = vsub.f32 %v40, %v65
    %v70 = vsub.f32 %v45, %v65
    %v71 = vsub.f32 %v50, %v65
    %v72 = vsub.f32 %v55, %v65
    %v73 = vsub.f32 %v60, %v65
    %v74 = vmul.f32 %v66, %v66
    %v75 = vmul.f32 %v67, %v67
    %v76 = vmul.f32 %v68, %v68
    %v77 = vmul.f32 %v69, %v69
    %v78 = vmul.f32 %v70, %v70
    %v79 = vmul.f32 %v71, %v71
    %v80 = vmul.f32 %v72, %v72
    %v81 = vmul.f32 %v73, %v73
    %v82 = vlaneseq
    %v83 = vshrl.u32 %v82, 7
    %v84 = vsub.s32 0, %v83
    %v85 = vrot.slane %v21, %v84
    %v86 = vmul.f32 %v74, %v85
    %v87 = vmul.f32 %v75, %v85
    %v88 = vmul.f32 %v76, %v85
    %v89 = vmul.f32 %v77, %v85
    %v90 = vmul.f32 %v78, %v85
    %v91 = vmul.f32 %v79, %v85
    %v92 = vmul.f32 %v80, %v85
    %v93 = vmul.f32 %v81, %v85
    %v94 = vmul.f32 %v86, 1.442695
    %v95 = vpow.pop %v94
    %v96 = vmul.f32 %v87, 1.442695
    %v97 = vpow.pop %v96
    %v98 = vmul.f32 %v88, 1.442695
    %v99 = vpow.pop %v98
    %v100 = vmul.f32 %v89, 1.442695
    %v101 = vpow.pop %v100
    %v102 = vmul.f32 %v90, 1.442695
    %v103 = vpow.pop %v102
    %v104 = vmul.f32 %v91, 1.442695
    %v105 = vpow.pop %v104
    %v106 = vmul.f32 %v92, 1.442695
    %v107 = vpow.pop %v106
    %v108 = vmul.f32 %v93, 1.442695
    %v109 = vpow.pop %v108
    %110 = vst [vmem:[#allocation2] sm:$0xff] %v95
    %111 = vst [vmem:[#allocation2 + $0x8] sm:$0xff] %v97
    %112 = vst [vmem:[#allocation2 + $0x10] sm:$0xff] %v99
    %113 = vst [vmem:[#allocation2 + $0x18] sm:$0xff] %v101
    %114 = vst [vmem:[#allocation2 + $0x20] sm:$0xff] %v103
    %115 = vst [vmem:[#allocation2 + $0x28] sm:$0xff] %v105
    %116 = vst [vmem:[#allocation2 + $0x30] sm:$0xff] %v107
    %117 = vst [vmem:[#allocation2 + $0x38] sm:$0xff] %v109
    // Predicated region
    $region10: #{tpu_custom_call.1} parent=1 // pred_check
      _
    $region11: #{tpu_custom_call.1} parent=1 // pred_check_branch
      %119 = sbr.rel (0) target = $region13
    $region12: #{tpu_custom_call.1} parent=1 // pred_region
      %s121 = ssub.s32 1024, 1024
      %122 = vsyncadd [#allocation3], %s121
      %s123 = sshll.u32 [#allocation2], 4
      %s124 = int_to_ptr.vmem [resolvable:$true] %s123
      %129 = dma.vmem_to_hbm [thread:$0]  %s124, 1024, %s2, [#allocation3], 128, 128, 8
    $region13: #{tpu_custom_call.1} parent=1 // pred_fallthru
      _
    // Predicated region
    $region14: #{tpu_custom_call.1} parent=1 // pred_check
      _
    $region15: #{tpu_custom_call.1} parent=1 // pred_check_branch
      %131 = sbr.rel (0) target = $region17
    $region16: #{tpu_custom_call.1} parent=1 // pred_region
      %132 = dma.done [#allocation3], 1024
    $region17: #{tpu_custom_call.1} parent=1 // pred_fallthru
      _
    %133 = vsyncpa [#allocation3], 1

</llo_original>
